<compile_context>
chip_gen: v5e
topology: v5e:2x2
jax: 0.10.0
libtpu: 0.0.40
codegen_flags: <defaults>
</compile_context>

<pallas_src>
import functools

import jax
import jax.numpy as jnp
from jax.experimental import pallas as pl
from jax.experimental.pallas import tpu as pltpu


# --------------------------------------------------------------------------
# Kernels
# --------------------------------------------------------------------------
def _ffn_resident_kernel(x_ref, w1_ref, b1_ref, w2_ref, b2_ref, o_ref, *,
                         matmul_dtype=None):
    # x_ref : (TM, d_model_p) row tile
    # w1_ref: (d_model_p, d_hidden_p) resident in VMEM   b1_ref: (1, d_hidden_p)
    # w2_ref: (d_hidden_p, d_model_p) resident in VMEM   b2_ref: (1, d_model_p)
    x = x_ref[...]
    w1 = w1_ref[...]
    w2 = w2_ref[...]
    if matmul_dtype is not None:
        x, w1, w2 = x.astype(matmul_dtype), w1.astype(matmul_dtype), w2.astype(matmul_dtype)
    h = jnp.dot(x, w1, preferred_element_type=jnp.float32)
    h = jnp.maximum(h + b1_ref[...].astype(jnp.float32), 0.0)        # ReLU on VPU (f32)
    out = jnp.dot(h.astype(w2.dtype), w2, preferred_element_type=jnp.float32)
    out = out + b2_ref[...].astype(jnp.float32)
    o_ref[...] = out.astype(o_ref.dtype)


def _ffn_hidden_tiled_kernel(x_ref, w1_ref, b1_ref, w2_ref, b2_ref, o_ref,
                             *scratch, matmul_dtype=None):
    # Grid = (row_tiles, hidden_tiles); hidden axis is a reduction ("arbitrary").
    # x_ref : (TM, d_model_p)         w1_ref: (d_model_p, TH)   b1_ref: (1, TH)
    # w2_ref: (TH, d_model_p)         b2_ref: (1, d_model_p)
    # scratch: () for f32 outputs (accumulate directly in o_ref), else
    #          (acc_ref,) with an f32 VMEM accumulator across hidden steps.
    acc_ref = scratch[0] if scratch else o_ref
    h_idx = pl.program_id(1)

    @pl.when(h_idx == 0)
    def _():
        acc_ref[...] = jnp.zeros_like(acc_ref)

    x = x_ref[...]
    w1 = w1_ref[...]
    w2 = w2_ref[...]
    if matmul_dtype is not None:
        x, w1, w2 = x.astype(matmul_dtype), w1.astype(matmul_dtype), w2.astype(matmul_dtype)
    h = jnp.dot(x, w1, preferred_element_type=jnp.float32)
    h = jnp.maximum(h + b1_ref[...].astype(jnp.float32), 0.0)        # ReLU is per-hidden-elem
    acc_ref[...] += jnp.dot(h.astype(w2.dtype), w2, preferred_element_type=jnp.float32)

    @pl.when(h_idx == pl.num_programs(1) - 1)
    def _():
        o_ref[...] = (acc_ref[...] + b2_ref[...].astype(jnp.float32)).astype(o_ref.dtype)


# --------------------------------------------------------------------------
# Configuration helpers
# --------------------------------------------------------------------------
def _round_up(n, m):
    return ((n + m - 1) // m) * m


def _pad_to(a, shape):
    pads = [(0, t - s) for s, t in zip(a.shape, shape)]
    if any(p[1] for p in pads):
        a = jnp.pad(a, pads)
    return a


@functools.lru_cache(maxsize=1)
def _device_budget():
    """(usable VMEM bytes, is_v7x, is_v6e) — generation-aware, ~80% of physical."""
    kind = ""
    try:
        kind = jax.devices()[0].device_kind.lower()
    except Exception:
        pass
    is_v7x = ("v7" in kind) or ("7x" in kind)
    is_v6e = "v6" in kind
    vmem = None
    try:
        vmem = int(pltpu.get_tpu_info().vmem_capacity_bytes)
    except Exception:
        vmem = None
    if vmem is None:
        vmem = 64 * 2**20 if is_v7x else 128 * 2**20
    return int(vmem * 0.80), is_v7x, is_v6e


def _pick_tile(dim_p, target, align=128):
    """Largest multiple of `align` that divides dim_p and is <= target."""
    best = align
    t = align
    limit = min(dim_p, max(target, align))
    while t <= limit:
        if dim_p % t == 0:
            best = t
        t += align
    return best


def _row_tiling(n_rows, target_tm, row_align, want_two_tiles):
    tm = min(max(target_tm, row_align), _round_up(n_rows, row_align))
    tm = _round_up(tm, row_align)
    rows_p = _round_up(n_rows, tm)
    if want_two_tiles and n_rows >= 2 * row_align:
        # v7x has 2 TensorCores: make sure the "parallel" row axis has >=2 tiles.
        while rows_p // tm < 2 and tm > row_align:
            tm = _round_up(max(tm // 2, row_align), row_align)
            rows_p = _round_up(n_rows, tm)
    return tm, rows_p


def _resident_footprint(tm, dm_p, dh_p, x_size, w_size):
    w_bytes = (dm_p * dh_p * 2 + dh_p + dm_p) * w_size        # single-buffered residents
    io_bytes = 2 * 2 * tm * dm_p * x_size                     # x + out, double-buffered
    tmp_bytes = 4 * tm * dh_p + 4 * tm * dm_p                 # f32 hidden + f32 epilogue
    return int((w_bytes + io_bytes + tmp_bytes) * 1.25)


def _tiled_footprint(tm, th, dm_p, x_size, w_size, out_is_f32):
    w_bytes = 2 * (dm_p * th + th * dm_p + th + dm_p) * w_size  # double-buffered slices
    io_bytes = 2 * 2 * tm * dm_p * x_size
    acc_bytes = 0 if out_is_f32 else tm * dm_p * 4
    tmp_bytes = 4 * tm * th + 4 * tm * dm_p
    return int((w_bytes + io_bytes + acc_bytes + tmp_bytes) * 1.25)


# --------------------------------------------------------------------------
# Wrapper
# --------------------------------------------------------------------------
@functools.partial(jax.jit, static_argnames=("tile_m", "tile_h", "matmul_dtype"))
def feed_forward(x, w1, b1, w2, b2, *, tile_m=None, tile_h=None, matmul_dtype=None):
    """Fused MLP: relu(x @ w1 + b1) @ w2 + b2 over the last dim of x.

    tile_m       : row-tile override (auto, generation-aware by default).
    tile_h       : force the d_hidden-streaming path with this hidden tile
                   (multiple of 128). Default: auto (resident if it fits VMEM).
    matmul_dtype : optional MXU operand dtype (e.g. jnp.bfloat16) — f32
                   accumulation and f32 bias/ReLU epilogue are kept.
    """
    orig_shape = x.shape
    d_model = orig_shape[-1]
    d_hidden = w1.shape[1]
    dtype = x.dtype
    x_size = jnp.dtype(dtype).itemsize
    w_size = jnp.dtype(w1.dtype).itemsize

    vmem_budget, is_v7x, is_v6e = _device_budget()

    d_model_p = _round_up(d_model, 128)
    d_hidden_128 = _round_up(d_hidden, 128)

    x2 = x.reshape(-1, d_model)
    n_rows = x2.shape[0]
    row_align = 16 if dtype == jnp.bfloat16 else 8

    # ---- path selection: resident weights if they fit the per-gen budget -------
    tm_res, rows_res = _row_tiling(n_rows, tile_m if tile_m is not None else 256,
                                   row_align, is_v7x)
    use_resident = (tile_h is None and
                    _resident_footprint(tm_res, d_model_p, d_hidden_128, x_size, w_size)
                    <= vmem_budget)

    if use_resident:
        tm, rows_p = tm_res, rows_res
        d_hidden_p = d_hidden_128
        th = None
    else:
        if tile_h is not None:
            if tile_h % 128 != 0:
                raise ValueError("tile_h must be a multiple of 128")
            th = tile_h
            d_hidden_p = _round_up(d_hidden, th)
        else:
            th = _pick_tile(d_hidden_128, 512)          # big hidden tile, no extra padding
            d_hidden_p = d_hidden_128
        # Streaming re-fetches weight slices once per row tile, so tile_m must be
        # large enough to reach the MXU/HBM roofline (v6e needs the most rows).
        tm_target = tile_m if tile_m is not None else (1024 if is_v6e else 512)
        tm, rows_p = _row_tiling(n_rows, tm_target, row_align, is_v7x)
        out_is_f32 = (dtype == jnp.float32)
        while (_tiled_footprint(tm, th, d_model_p, x_size, w_size, out_is_f32)
               > vmem_budget and tm > row_align):
            tm = _round_up(max(tm // 2, row_align), row_align)
            rows_p = _round_up(n_rows, tm)

    # ---- padding (no-ops when dims are already lane / tile aligned) ------------
    x_p = _pad_to(x2, (rows_p, d_model_p))
    w1_p = _pad_to(w1, (d_model_p, d_hidden_p))
    b1_p = _pad_to(b1.reshape(1, -1), (1, d_hidden_p))
    w2_p = _pad_to(w2, (d_hidden_p, d_model_p))
    b2_p = _pad_to(b2.reshape(1, -1), (1, d_model_p))

    out_shape = jax.ShapeDtypeStruct((rows_p, d_model_p), dtype)

    if use_resident:
        # Weights fully resident in VMEM (single HBM read), rows pipelined.
        kernel = functools.partial(_ffn_resident_kernel, matmul_dtype=matmul_dtype)
        out_p = pl.pallas_call(
            kernel,
            out_shape=out_shape,
            grid_spec=pltpu.PrefetchScalarGridSpec(
                num_scalar_prefetch=0,
                grid=(rows_p // tm,),
                in_specs=[
                    pl.BlockSpec((tm, d_model_p), lambda i: (i, 0)),
                    pl.BlockSpec(memory_space=pltpu.MemorySpace.VMEM),   # W1 resident
                    pl.BlockSpec(memory_space=pltpu.MemorySpace.VMEM),   # b1 resident
                    pl.BlockSpec(memory_space=pltpu.MemorySpace.VMEM),   # W2 resident
                    pl.BlockSpec(memory_space=pltpu.MemorySpace.VMEM),   # b2 resident
                ],
                out_specs=pl.BlockSpec((tm, d_model_p), lambda i: (i, 0)),
            ),
            compiler_params=pltpu.CompilerParams(
                dimension_semantics=("parallel",),
                vmem_limit_bytes=vmem_budget),
        )(x_p, w1_p, b1_p, w2_p, b2_p)
    else:
        # d_hidden streamed: weight slices pipelined; f32 outputs accumulate
        # directly into o_ref (no scratch), other dtypes use an f32 scratch acc.
        out_is_f32 = (dtype == jnp.float32)
        scratch = [] if out_is_f32 else [pltpu.VMEM((tm, d_model_p), jnp.float32)]
        kernel = functools.partial(_ffn_hidden_tiled_kernel, matmul_dtype=matmul_dtype)
        # TODO(synk): on v6e, pipeline_mode=pl.Buffered(3) for the W1/W2 slices is a
        # few-% win if VMEM headroom allows.
        out_p = pl.pallas_call(
            kernel,
            out_shape=out_shape,
            grid_spec=pltpu.PrefetchScalarGridSpec(
                num_scalar_prefetch=0,
                grid=(rows_p // tm, d_hidden_p // th),
                in_specs=[
                    pl.BlockSpec((tm, d_model_p), lambda i, h: (i, 0)),
                    pl.BlockSpec((d_model_p, th), lambda i, h: (0, h)),
                    pl.BlockSpec((1, th),         lambda i, h: (0, h)),
                    pl.BlockSpec((th, d_model_p), lambda i, h: (h, 0)),
                    pl.BlockSpec((1, d_model_p),  lambda i, h: (0, 0)),
                ],
                out_specs=pl.BlockSpec((tm, d_model_p), lambda i, h: (i, 0)),
                scratch_shapes=scratch,
            ),
            compiler_params=pltpu.CompilerParams(
                dimension_semantics=("parallel", "arbitrary"),
                vmem_limit_bytes=vmem_budget),
        )(x_p, w1_p, b1_p, w2_p, b2_p)

    out = out_p
    if rows_p != n_rows or d_model_p != d_model:
        out = out[:n_rows, :d_model]
    return out.reshape(orig_shape)


# --------------------------------------------------------------------------
# Params (match nn.Linear init: U(-1/sqrt(fan_in), 1/sqrt(fan_in)))
# --------------------------------------------------------------------------
def init_params(key, d_model, d_hidden, dtype=jnp.float32):
    k1, k2, k3, k4 = jax.random.split(key, 4)
    bound1 = 1.0 / jnp.sqrt(d_model)
    bound2 = 1.0 / jnp.sqrt(d_hidden)
    # Stored transposed relative to PyTorch (weight.T), i.e. (in, out).
    # Note: for best perf, pick d_model/d_hidden as multiples of 128 so the
    # wrapper's padding becomes a no-op.
    w1 = jax.random.uniform(k1, (d_model, d_hidden), dtype, -bound1, bound1)
    b1 = jax.random.uniform(k2, (1, d_hidden), dtype, -bound1, bound1)
    w2 = jax.random.uniform(k3, (d_hidden, d_model), dtype, -bound2, bound2)
    b2 = jax.random.uniform(k4, (1, d_model), dtype, -bound2, bound2)
    return w1, b1, w2, b2


if __name__ == "__main__":
    batch, seq, d_model, d_hidden = 2, 8, 32, 512

    key = jax.random.PRNGKey(0)
    kx, kp = jax.random.split(key)
    x = jax.random.normal(kx, (batch, seq, d_model), jnp.float32)
    w1, b1, w2, b2 = init_params(kp, d_model, d_hidden, jnp.float32)

    # Pure-JAX reference of the same math (f32).
    ref = jnp.maximum(x @ w1 + b1[0], 0.0) @ w2 + b2[0]

    # Path 1: auto-selected (weights resident in VMEM at these sizes), f32.
    out_auto = jax.block_until_ready(feed_forward(x, w1, b1, w2, b2))
    assert out_auto.shape == x.shape
    assert jnp.allclose(out_auto, ref, atol=1e-4, rtol=1e-4)

    # Path 2: forced hidden-streaming path, f32 (accumulates directly in o_ref).
    out_til = jax.block_until_ready(feed_forward(x, w1, b1, w2, b2, tile_h=256))
    assert jnp.allclose(out_til, ref, atol=1e-4, rtol=1e-4)

    # Path 3: bf16 operands, streaming path with f32 scratch accumulator.
    xb = x.astype(jnp.bfloat16)
    w1b, b1b, w2b, b2b = (t.astype(jnp.bfloat16) for t in (w1, b1, w2, b2))
    out_bf = jax.block_until_ready(feed_forward(xb, w1b, b1b, w2b, b2b, tile_h=128))
    h_bf = jnp.maximum(
        jnp.dot(xb.reshape(-1, d_model), w1b, preferred_element_type=jnp.float32)
        + b1b[0].astype(jnp.float32), 0.0)
    ref_bf = (jnp.dot(h_bf.astype(jnp.bfloat16), w2b, preferred_element_type=jnp.float32)
              + b2b[0].astype(jnp.float32)).astype(jnp.bfloat16).reshape(x.shape)
    assert jnp.allclose(out_bf.astype(jnp.float32), ref_bf.astype(jnp.float32),
                        atol=5e-2, rtol=5e-2)

    # Path 4: f32 storage, bf16 MXU operands (flag-gated numerics trade-off).
    out_mx = jax.block_until_ready(
        feed_forward(x, w1, b1, w2, b2, matmul_dtype=jnp.bfloat16))
    assert jnp.allclose(out_mx, ref, atol=5e-2, rtol=5e-2)

    print("KERNEL_OK")
</pallas_src>

<mosaic_0001>
module attributes {stable_mosaic.version = 11 : i64} {
  func.func @_ffn_resident_kernel(%arg0: i32, %arg1: memref<16x128xf32, #tpu.memory_space<vmem>>, %arg2: memref<128x512xf32, #tpu.memory_space<vmem>>, %arg3: memref<1x512xf32, #tpu.memory_space<vmem>>, %arg4: memref<512x128xf32, #tpu.memory_space<vmem>>, %arg5: memref<1x128xf32, #tpu.memory_space<vmem>>, %arg6: memref<16x128xf32, #tpu.memory_space<vmem>>) attributes {dimension_semantics = [#tpu.dimension_semantics<parallel>], iteration_bounds = array<i64: 1>, scalar_prefetch = 0 : i64, scratch_operands = 0 : i64, tpu.core_type = #tpu.core_type<tc>, window_params = [{transform_indices = @transform_0, window_bounds = array<i64: 16, 128>}, {pipeline_mode = #tpu.pipeline_mode<synchronous>, transform_indices = @transform_1, window_bounds = array<i64: 128, 512>}, {pipeline_mode = #tpu.pipeline_mode<synchronous>, transform_indices = @transform_2, window_bounds = array<i64: 1, 512>}, {pipeline_mode = #tpu.pipeline_mode<synchronous>, transform_indices = @transform_3, window_bounds = array<i64: 512, 128>}, {pipeline_mode = #tpu.pipeline_mode<synchronous>, transform_indices = @transform_4, window_bounds = array<i64: 1, 128>}, {transform_indices = @transform_5, window_bounds = array<i64: 16, 128>}]} {
    %c0 = arith.constant 0 : index
    %c0_0 = arith.constant 0 : index
    %0 = vector.load %arg1[%c0, %c0_0] : memref<16x128xf32, #tpu.memory_space<vmem>>, vector<16x128xf32>
    %c0_1 = arith.constant 0 : index
    %c0_2 = arith.constant 0 : index
    %1 = vector.load %arg2[%c0_1, %c0_2] : memref<128x512xf32, #tpu.memory_space<vmem>>, vector<128x512xf32>
    %c0_3 = arith.constant 0 : index
    %c0_4 = arith.constant 0 : index
    %2 = vector.load %arg4[%c0_3, %c0_4] : memref<512x128xf32, #tpu.memory_space<vmem>>, vector<512x128xf32>
    %cst = arith.constant dense<0.000000e+00> : vector<16x512xf32>
    %3 = tpu.matmul %0, %1, %cst {dimension_numbers = #tpu.dot_dimension_numbers<[1], [0], [0], [1], [0, 0, 1, 1], [], []>} : vector<16x128xf32>, vector<128x512xf32>, vector<16x512xf32> -> vector<16x512xf32>
    %c0_5 = arith.constant 0 : index
    %c0_6 = arith.constant 0 : index
    %4 = vector.load %arg3[%c0_5, %c0_6] : memref<1x512xf32, #tpu.memory_space<vmem>>, vector<1x512xf32>
    %5 = vector.broadcast %4 : vector<1x512xf32> to vector<16x512xf32>
    %6 = arith.addf %3, %5 : vector<16x512xf32>
    %cst_7 = arith.constant 0.000000e+00 : f32
    %7 = vector.broadcast %cst_7 : f32 to vector<16x512xf32>
    %8 = arith.maximumf %6, %7 : vector<16x512xf32>
    %cst_8 = arith.constant dense<0.000000e+00> : vector<16x128xf32>
    %9 = tpu.matmul %8, %2, %cst_8 {dimension_numbers = #tpu.dot_dimension_numbers<[1], [0], [0], [1], [0, 0, 1, 1], [], []>} : vector<16x512xf32>, vector<512x128xf32>, vector<16x128xf32> -> vector<16x128xf32>
    %c0_9 = arith.constant 0 : index
    %c0_10 = arith.constant 0 : index
    %10 = vector.load %arg5[%c0_9, %c0_10] : memref<1x128xf32, #tpu.memory_space<vmem>>, vector<1x128xf32>
    %11 = vector.broadcast %10 : vector<1x128xf32> to vector<16x128xf32>
    %12 = arith.addf %9, %11 : vector<16x128xf32>
    %c0_11 = arith.constant 0 : index
    %c0_12 = arith.constant 0 : index
    %13 = vector.load %arg6[%c0_11, %c0_12] : memref<16x128xf32, #tpu.memory_space<vmem>>, vector<16x128xf32>
    tpu.vector_store %arg6[%c0_11, %c0_12], %12 {strides = array<i32>} : memref<16x128xf32, #tpu.memory_space<vmem>>, vector<16x128xf32>,
    return
  }
  func.func @transform_0(%arg0: i32) -> (i32, i32) {
    %c0_i32 = arith.constant 0 : i32
    %c0_i32_0 = arith.constant 0 : i32
    return %arg0, %c0_i32 : i32, i32
  }
  func.func @transform_1(%arg0: i32) -> (i32, i32) {
    %c0_i32 = arith.constant 0 : i32
    %c0_i32_0 = arith.constant 0 : i32
    %c0_i32_1 = arith.constant 0 : i32
    return %c0_i32, %c0_i32_0 : i32, i32
  }
  func.func @transform_2(%arg0: i32) -> (i32, i32) {
    %c0_i32 = arith.constant 0 : i32
    %c0_i32_0 = arith.constant 0 : i32
    %c0_i32_1 = arith.constant 0 : i32
    return %c0_i32, %c0_i32_0 : i32, i32
  }
  func.func @transform_3(%arg0: i32) -> (i32, i32) {
    %c0_i32 = arith.constant 0 : i32
    %c0_i32_0 = arith.constant 0 : i32
    %c0_i32_1 = arith.constant 0 : i32
    return %c0_i32, %c0_i32_0 : i32, i32
  }
  func.func @transform_4(%arg0: i32) -> (i32, i32) {
    %c0_i32 = arith.constant 0 : i32
    %c0_i32_0 = arith.constant 0 : i32
    %c0_i32_1 = arith.constant 0 : i32
    return %c0_i32, %c0_i32_0 : i32, i32
  }
  func.func @transform_5(%arg0: i32) -> (i32, i32) {
    %c0_i32 = arith.constant 0 : i32
    %c0_i32_0 = arith.constant 0 : i32
    return %arg0, %c0_i32 : i32, i32
  }
}

</mosaic_0001>

<llo_original>
// kernel: feed_forward.1
$region0: #{feed_forward.1}
  #allocation0 [shape = 'u32[]', space=smem, size = 0x4, offset = 0x4, fixed_abs, tag = 'smem constant byte address 0x4 - core index']
  #allocation1 [shape = 'u32[72,128]{1,0:T(1,128)}', space=vmem, size = 0x9000, scoped, tag = 'internal scratch']
  %s0 = inlined_call_operand.vmem [shape: f32[16,128], index: 0, kind: input, shape index: {}]
  %s1 = inlined_call_operand.vmem [shape: f32[128,512], index: 1, kind: input, shape index: {}]
  %s2 = inlined_call_operand.vmem [shape: f32[1,512], index: 2, kind: input, shape index: {}]
  %s3 = inlined_call_operand.vmem [shape: f32[512,128], index: 3, kind: input, shape index: {}]
  %s4 = inlined_call_operand.vmem [shape: f32[1,128], index: 4, kind: input, shape index: {}]
  %s5 = inlined_call_operand.vmem [shape: f32[16,128], index: 5, kind: output, shape index: {}]
  %s6 = sld [smem:[#allocation0]]
  $region30: #{feed_forward.1} parent=0
    _
  %s8 = ssub.s32 1, %s6
  %s9 = scalar_select 0, %s8, %s6
  // Predicated region
  $region2: #{feed_forward.1} parent=0 // pred_check
    _
  $region3: #{feed_forward.1} parent=0 // pred_check_branch
    %11 = sbr.rel (0) target = $region5
  $region4: #{feed_forward.1} parent=0 // pred_region
    _
  $region5: #{feed_forward.1} parent=0 // pred_fallthru
    _
  // Predicated region
  $region6: #{feed_forward.1} parent=0 // pred_check
    _
  $region7: #{feed_forward.1} parent=0 // pred_check_branch
    %13 = sbr.rel (0) target = $region9
  $region8: #{feed_forward.1} parent=0 // pred_region
    _
  $region9: #{feed_forward.1} parent=0 // pred_fallthru
    _
  // Predicated region
  $region10: #{feed_forward.1} parent=0 // pred_check
    _
  $region11: #{feed_forward.1} parent=0 // pred_check_branch
    %15 = sbr.rel (0) target = $region13
  $region12: #{feed_forward.1} parent=0 // pred_region
    _
  $region13: #{feed_forward.1} parent=0 // pred_fallthru
    _
  // Predicated region
  $region14: #{feed_forward.1} parent=0 // pred_check
    _
  $region15: #{feed_forward.1} parent=0 // pred_check_branch
    %17 = sbr.rel (0) target = $region17
  $region16: #{feed_forward.1} parent=0 // pred_region
    _
  $region17: #{feed_forward.1} parent=0 // pred_fallthru
    _
  // Predicated region
  $region18: #{feed_forward.1} parent=0 // pred_check
    _
  $region19: #{feed_forward.1} parent=0 // pred_check_branch
    %19 = sbr.rel (0) target = $region21
  $region20: #{feed_forward.1} parent=0 // pred_region
    _
  $region21: #{feed_forward.1} parent=0 // pred_fallthru
    _
  %v20 = vld [vmem:[%s0] sm:$0xff]
  %v21 = vld [vmem:[%s0 + $0x8] sm:$0xff]
  %v22 = vld [vmem:[%s1] sm:$0xff]
  %v23 = vld [vmem:[%s1 + $0x8] sm:$0xff]
  %v24 = vld [vmem:[%s1 + $0x10] sm:$0xff]
  %v25 = vld [vmem:[%s1 + $0x18] sm:$0xff]
  %v26 = vld [vmem:[%s1 + $0x20] sm:$0xff]
  %v27 = vld [vmem:[%s1 + $0x28] sm:$0xff]
  %v28 = vld [vmem:[%s1 + $0x30] sm:$0xff]
  %v29 = vld [vmem:[%s1 + $0x38] sm:$0xff]
  %v30 = vld [vmem:[%s1 + $0x40] sm:$0xff]
  %v31 = vld [vmem:[%s1 + $0x48] sm:$0xff]
  %v32 = vld [vmem:[%s1 + $0x50] sm:$0xff]
  %v33 = vld [vmem:[%s1 + $0x58] sm:$0xff]
  %v34 = vld [vmem:[%s1 + $0x60] sm:$0xff]
  %v35 = vld [vmem:[%s1 + $0x68] sm:$0xff]
  %v36 = vld [vmem:[%s1 + $0x70] sm:$0xff]
  %v37 = vld [vmem:[%s1 + $0x78] sm:$0xff]
  %v38 = vld [vmem:[%s1 + $0x80] sm:$0xff]
  %v39 = vld [vmem:[%s1 + $0x88] sm:$0xff]
  %v40 = vld [vmem:[%s1 + $0x90] sm:$0xff]
  %v41 = vld [vmem:[%s1 + $0x98] sm:$0xff]
  %v42 = vld [vmem:[%s1 + $0xa0] sm:$0xff]
  %v43 = vld [vmem:[%s1 + $0xa8] sm:$0xff]
  %v44 = vld [vmem:[%s1 + $0xb0] sm:$0xff]
  %v45 = vld [vmem:[%s1 + $0xb8] sm:$0xff]
  %v46 = vld [vmem:[%s1 + $0xc0] sm:$0xff]
  %v47 = vld [vmem:[%s1 + $0xc8] sm:$0xff]
  %v48 = vld [vmem:[%s1 + $0xd0] sm:$0xff]
  %v49 = vld [vmem:[%s1 + $0xd8] sm:$0xff]
  %v50 = vld [vmem:[%s1 + $0xe0] sm:$0xff]
  %v51 = vld [vmem:[%s1 + $0xe8] sm:$0xff]
  %v52 = vld [vmem:[%s1 + $0xf0] sm:$0xff]
  %v53 = vld [vmem:[%s1 + $0xf8] sm:$0xff]
  %v54 = vld [vmem:[%s1 + $0x100] sm:$0xff]
  %v55 = vld [vmem:[%s1 + $0x108] sm:$0xff]
  %v56 = vld [vmem:[%s1 + $0x110] sm:$0xff]
  %v57 = vld [vmem:[%s1 + $0x118] sm:$0xff]
  %v58 = vld [vmem:[%s1 + $0x120] sm:$0xff]
  %v59 = vld [vmem:[%s1 + $0x128] sm:$0xff]
  %v60 = vld [vmem:[%s1 + $0x130] sm:$0xff]
  %v61 = vld [vmem:[%s1 + $0x138] sm:$0xff]
  %v62 = vld [vmem:[%s1 + $0x140] sm:$0xff]
  %v63 = vld [vmem:[%s1 + $0x148] sm:$0xff]
  %v64 = vld [vmem:[%s1 + $0x150] sm:$0xff]
  %v65 = vld [vmem:[%s1 + $0x158] sm:$0xff]
  %v66 = vld [vmem:[%s1 + $0x160] sm:$0xff]
  %v67 = vld [vmem:[%s1 + $0x168] sm:$0xff]
  %v68 = vld [vmem:[%s1 + $0x170] sm:$0xff]
  %v69 = vld [vmem:[%s1 + $0x178] sm:$0xff]
  %v70 = vld [vmem:[%s1 + $0x180] sm:$0xff]
  %v71 = vld [vmem:[%s1 + $0x188] sm:$0xff]
  %v72 = vld [vmem:[%s1 + $0x190] sm:$0xff]
  %v73 = vld [vmem:[%s1 + $0x198] sm:$0xff]
  %v74 = vld [vmem:[%s1 + $0x1a0] sm:$0xff]
  %v75 = vld [vmem:[%s1 + $0x1a8] sm:$0xff]
  %v76 = vld [vmem:[%s1 + $0x1b0] sm:$0xff]
  %v77 = vld [vmem:[%s1 + $0x1b8] sm:$0xff]
  %v78 = vld [vmem:[%s1 + $0x1c0] sm:$0xff]
  %v79 = vld [vmem:[%s1 + $0x1c8] sm:$0xff]
  %v80 = vld [vmem:[%s1 + $0x1d0] sm:$0xff]
  %v81 = vld [vmem:[%s1 + $0x1d8] sm:$0xff]
  %v82 = vld [vmem:[%s1 + $0x1e0] sm:$0xff]
  %v83 = vld [vmem:[%s1 + $0x1e8] sm:$0xff]
  %v84 = vld [vmem:[%s1 + $0x1f0] sm:$0xff]
  %v85 = vld [vmem:[%s1 + $0x1f8] sm:$0xff]
  %v86 = vld [vmem:[%s3] sm:$0xff]
  %v87 = vld [vmem:[%s3 + $0x8] sm:$0xff]
  %v88 = vld [vmem:[%s3 + $0x10] sm:$0xff]
  %v89 = vld [vmem:[%s3 + $0x18] sm:$0xff]
  %v90 = vld [vmem:[%s3 + $0x20] sm:$0xff]
  %v91 = vld [vmem:[%s3 + $0x28] sm:$0xff]
  %v92 = vld [vmem:[%s3 + $0x30] sm:$0xff]
  %v93 = vld [vmem:[%s3 + $0x38] sm:$0xff]
  %v94 = vld [vmem:[%s3 + $0x40] sm:$0xff]
  %v95 = vld [vmem:[%s3 + $0x48] sm:$0xff]
  %v96 = vld [vmem:[%s3 + $0x50] sm:$0xff]
  %v97 = vld [vmem:[%s3 + $0x58] sm:$0xff]
  %v98 = vld [vmem:[%s3 + $0x60] sm:$0xff]
  %v99 = vld [vmem:[%s3 + $0x68] sm:$0xff]
  %v100 = vld [vmem:[%s3 + $0x70] sm:$0xff]
  %v101 = vld [vmem:[%s3 + $0x78] sm:$0xff]
  %v102 = vld [vmem:[%s3 + $0x80] sm:$0xff]
  %v103 = vld [vmem:[%s3 + $0x88] sm:$0xff]
  %v104 = vld [vmem:[%s3 + $0x90] sm:$0xff]
  %v105 = vld [vmem:[%s3 + $0x98] sm:$0xff]
  %v106 = vld [vmem:[%s3 + $0xa0] sm:$0xff]
  %v107 = vld [vmem:[%s3 + $0xa8] sm:$0xff]
  %v108 = vld [vmem:[%s3 + $0xb0] sm:$0xff]
  %v109 = vld [vmem:[%s3 + $0xb8] sm:$0xff]
  %v110 = vld [vmem:[%s3 + $0xc0] sm:$0xff]
  %v111 = vld [vmem:[%s3 + $0xc8] sm:$0xff]
  %v112 = vld [vmem:[%s3 + $0xd0] sm:$0xff]
  %v113 = vld [vmem:[%s3 + $0xd8] sm:$0xff]
  %v114 = vld [vmem:[%s3 + $0xe0] sm:$0xff]
  %v115 = vld [vmem:[%s3 + $0xe8] sm:$0xff]
  %v116 = vld [vmem:[%s3 + $0xf0] sm:$0xff]
  %v117 = vld [vmem:[%s3 + $0xf8] sm:$0xff]
  %v118 = vld [vmem:[%s3 + $0x100] sm:$0xff]
  %v119 = vld [vmem:[%s3 + $0x108] sm:$0xff]
  %v120 = vld [vmem:[%s3 + $0x110] sm:$0xff]
  %v121 = vld [vmem:[%s3 + $0x118] sm:$0xff]
  %v122 = vld [vmem:[%s3 + $0x120] sm:$0xff]
  %v123 = vld [vmem:[%s3 + $0x128] sm:$0xff]
  %v124 = vld [vmem:[%s3 + $0x130] sm:$0xff]
  %v125 = vld [vmem:[%s3 + $0x138] sm:$0xff]
  %v126 = vld [vmem:[%s3 + $0x140] sm:$0xff]
  %v127 = vld [vmem:[%s3 + $0x148] sm:$0xff]
  %v128 = vld [vmem:[%s3 + $0x150] sm:$0xff]
  %v129 = vld [vmem:[%s3 + $0x158] sm:$0xff]
  %v130 = vld [vmem:[%s3 + $0x160] sm:$0xff]
  %v131 = vld [vmem:[%s3 + $0x168] sm:$0xff]
  %v132 = vld [vmem:[%s3 + $0x170] sm:$0xff]
  %v133 = vld [vmem:[%s3 + $0x178] sm:$0xff]
  %v134 = vld [vmem:[%s3 + $0x180] sm:$0xff]
  %v135 = vld [vmem:[%s3 + $0x188] sm:$0xff]
  %v136 = vld [vmem:[%s3 + $0x190] sm:$0xff]
  %v137 = vld [vmem:[%s3 + $0x198] sm:$0xff]
  %v138 = vld [vmem:[%s3 + $0x1a0] sm:$0xff]
  %v139 = vld [vmem:[%s3 + $0x1a8] sm:$0xff]
  %v140 = vld [vmem:[%s3 + $0x1b0] sm:$0xff]
  %v141 = vld [vmem:[%s3 + $0x1b8] sm:$0xff]
  %v142 = vld [vmem:[%s3 + $0x1c0] sm:$0xff]
  %v143 = vld [vmem:[%s3 + $0x1c8] sm:$0xff]
  %v144 = vld [vmem:[%s3 + $0x1d0] sm:$0xff]
  %v145 = vld [vmem:[%s3 + $0x1d8] sm:$0xff]
  %v146 = vld [vmem:[%s3 + $0x1e0] sm:$0xff]
  %v147 = vld [vmem:[%s3 + $0x1e8] sm:$0xff]
  %v148 = vld [vmem:[%s3 + $0x1f0] sm:$0xff]
  %v149 = vld [vmem:[%s3 + $0x1f8] sm:$0xff]
  %v150 = vld [vmem:[%s2] sm:$0xf]
  %v152 = vperm.slane %v150, 0
  %v153 = vperm.slane %v150, 1
  %v154 = vperm.slane %v150, 2
  %v155 = vperm.slane %v150, 3
  %160 = vmatpush.msra.mxu0 %v82
  %161 = vmatpush.msra.mxu0 %v78
  %162 = vmatpush.msra.mxu0 %v74
  %163 = vmatpush.msra.mxu0 %v70
  %164 = vmatpush.msra.mxu0 %v66
  %165 = vmatpush.msra.mxu0 %v62
  %166 = vmatpush.msra.mxu0 %v58
  %167 = vmatpush.msra.mxu0 %v54
  %168 = vmatpush.msra.mxu0 %v50
  %169 = vmatpush.msra.mxu0 %v46
  %170 = vmatpush.msra.mxu0 %v42
  %171 = vmatpush.msra.mxu0 %v38
  %172 = vmatpush.msra.mxu0 %v34
  %173 = vmatpush.msra.mxu0 %v30
  %174 = vmatpush.msra.mxu0 %v26
  %175 = vmatpush.msra.mxu0 %v22
  %176 = vmatmul.f32.gmra.mxu0 %v20
  %v177 = vpop.f32.mrf.mxu0
  %v178 = vadd.f32 %v152, %v177
  %179 = vmatmul.f32.gmra.mxu0 %v21
  %v180 = vpop.f32.mrf.mxu0
  %v181 = vadd.f32 %v152, %v180
  %182 = vdwg.mxu0
  %183 = vmatpush.msra.mxu0 %v83
  %184 = vmatpush.msra.mxu0 %v79
  %185 = vmatpush.msra.mxu0 %v75
  %186 = vmatpush.msra.mxu0 %v71
  %187 = vmatpush.msra.mxu0 %v67
  %188 = vmatpush.msra.mxu0 %v63
  %189 = vmatpush.msra.mxu0 %v59
  %190 = vmatpush.msra.mxu0 %v55
  %191 = vmatpush.msra.mxu0 %v51
  %192 = vmatpush.msra.mxu0 %v47
  %193 = vmatpush.msra.mxu0 %v43
  %194 = vmatpush.msra.mxu0 %v39
  %195 = vmatpush.msra.mxu0 %v35
  %196 = vmatpush.msra.mxu0 %v31
  %197 = vmatpush.msra.mxu0 %v27
  %198 = vmatpush.msra.mxu0 %v23
  %199 = vmatmul.f32.gmra.mxu0 %v20
  %v200 = vpop.f32.mrf.mxu0
  %v201 = vadd.f32 %v153, %v200
  %202 = vmatmul.f32.gmra.mxu0 %v21
  %v203 = vpop.f32.mrf.mxu0
  %v204 = vadd.f32 %v153, %v203
  %205 = vdwg.mxu0
  %206 = vmatpush.msra.mxu0 %v84
  %207 = vmatpush.msra.mxu0 %v80
  %208 = vmatpush.msra.mxu0 %v76
  %209 = vmatpush.msra.mxu0 %v72
  %210 = vmatpush.msra.mxu0 %v68
  %211 = vmatpush.msra.mxu0 %v64
  %212 = vmatpush.msra.mxu0 %v60
  %213 = vmatpush.msra.mxu0 %v56
  %214 = vmatpush.msra.mxu0 %v52
  %215 = vmatpush.msra.mxu0 %v48
  %216 = vmatpush.msra.mxu0 %v44
  %217 = vmatpush.msra.mxu0 %v40
  %218 = vmatpush.msra.mxu0 %v36
  %219 = vmatpush.msra.mxu0 %v32
  %220 = vmatpush.msra.mxu0 %v28
  %221 = vmatpush.msra.mxu0 %v24
  %222 = vmatmul.f32.gmra.mxu0 %v20
  %v223 = vpop.f32.mrf.mxu0
  %v224 = vadd.f32 %v154, %v223
  %225 = vmatmul.f32.gmra.mxu0 %v21
  %v226 = vpop.f32.mrf.mxu0
  %v227 = vadd.f32 %v154, %v226
  %228 = vdwg.mxu0
  %229 = vmatpush.msra.mxu0 %v85
  %230 = vmatpush.msra.mxu0 %v81
  %231 = vmatpush.msra.mxu0 %v77
  %232 = vmatpush.msra.mxu0 %v73
  %233 = vmatpush.msra.mxu0 %v69
  %234 = vmatpush.msra.mxu0 %v65
  %235 = vmatpush.msra.mxu0 %v61
  %236 = vmatpush.msra.mxu0 %v57
  %237 = vmatpush.msra.mxu0 %v53
  %238 = vmatpush.msra.mxu0 %v49
  %239 = vmatpush.msra.mxu0 %v45
  %240 = vmatpush.msra.mxu0 %v41
  %241 = vmatpush.msra.mxu0 %v37
  %242 = vmatpush.msra.mxu0 %v33
  %243 = vmatpush.msra.mxu0 %v29
  %244 = vmatpush.msra.mxu0 %v25
  %245 = vmatmul.f32.gmra.mxu0 %v20
  %v246 = vpop.f32.mrf.mxu0
  %v247 = vadd.f32 %v155, %v246
  %248 = vmatmul.f32.gmra.mxu0 %v21
  %v249 = vpop.f32.mrf.mxu0
  %v250 = vadd.f32 %v155, %v249
  %251 = vdwg.mxu0
  %v252 = vmax.f32 %v178, 0.0
  %v253 = vmax.f32 %v201, 0.0
  %v254 = vmax.f32 %v224, 0.0
  %v255 = vmax.f32 %v247, 0.0
  %v256 = vmax.f32 %v181, 0.0
  %v257 = vmax.f32 %v204, 0.0
  %v258 = vmax.f32 %v227, 0.0
  %v259 = vmax.f32 %v250, 0.0
  %v260 = vld [vmem:[%s4] sm:$0x1]
  %v262 = vperm.slane %v260, 0
  %264 = vmatpush.msra.mxu0 %v101
  %265 = vmatpush.msra.mxu0 %v100
  %266 = vmatpush.msra.mxu0 %v99
  %267 = vmatpush.msra.mxu0 %v98
  %268 = vmatpush.msra.mxu0 %v97
  %269 = vmatpush.msra.mxu0 %v96
  %270 = vmatpush.msra.mxu0 %v95
  %271 = vmatpush.msra.mxu0 %v94
  %272 = vmatpush.msra.mxu0 %v93
  %273 = vmatpush.msra.mxu0 %v92
  %274 = vmatpush.msra.mxu0 %v91
  %275 = vmatpush.msra.mxu0 %v90
  %276 = vmatpush.msra.mxu0 %v89
  %277 = vmatpush.msra.mxu0 %v88
  %278 = vmatpush.msra.mxu0 %v87
  %279 = vmatpush.msra.mxu0 %v86
  %280 = vmatmul.f32.gmra.mxu0 %v252
  %v281 = vpop.f32.mrf.mxu0
  %v282 = vadd.f32 %v262, %v281
  %283 = vmatmul.f32.gmra.mxu0 %v256
  %v284 = vpop.f32.mrf.mxu0
  %v285 = vadd.f32 %v262, %v284
  %286 = vdwg.mxu0
  %287 = vmatpush.msra.mxu0 %v117
  %288 = vmatpush.msra.mxu0 %v116
  %289 = vmatpush.msra.mxu0 %v115
  %290 = vmatpush.msra.mxu0 %v114
  %291 = vmatpush.msra.mxu0 %v113
  %292 = vmatpush.msra.mxu0 %v112
  %293 = vmatpush.msra.mxu0 %v111
  %294 = vmatpush.msra.mxu0 %v110
  %295 = vmatpush.msra.mxu0 %v109
  %296 = vmatpush.msra.mxu0 %v108
  %297 = vmatpush.msra.mxu0 %v107
  %298 = vmatpush.msra.mxu0 %v106
  %299 = vmatpush.msra.mxu0 %v105
  %300 = vmatpush.msra.mxu0 %v104
  %301 = vmatpush.msra.mxu0 %v103
  %302 = vmatpush.msra.mxu0 %v102
  %303 = vmatmul.f32.gmra.mxu0 %v253
  %v304 = vpop.f32.mrf.mxu0
  %v305 = vadd.f32 %v282, %v304
  %306 = vmatmul.f32.gmra.mxu0 %v257
  %v307 = vpop.f32.mrf.mxu0
  %v308 = vadd.f32 %v285, %v307
  %309 = vdwg.mxu0
  %310 = vmatpush.msra.mxu0 %v133
  %311 = vmatpush.msra.mxu0 %v132
  %312 = vmatpush.msra.mxu0 %v131
  %313 = vmatpush.msra.mxu0 %v130
  %314 = vmatpush.msra.mxu0 %v129
  %315 = vmatpush.msra.mxu0 %v128
  %316 = vmatpush.msra.mxu0 %v127
  %317 = vmatpush.msra.mxu0 %v126
  %318 = vmatpush.msra.mxu0 %v125
  %319 = vmatpush.msra.mxu0 %v124
  %320 = vmatpush.msra.mxu0 %v123
  %321 = vmatpush.msra.mxu0 %v122
  %322 = vmatpush.msra.mxu0 %v121
  %323 = vmatpush.msra.mxu0 %v120
  %324 = vmatpush.msra.mxu0 %v119
  %325 = vmatpush.msra.mxu0 %v118
  %326 = vmatmul.f32.gmra.mxu0 %v254
  %v327 = vpop.f32.mrf.mxu0
  %v328 = vadd.f32 %v305, %v327
  %329 = vmatmul.f32.gmra.mxu0 %v258
  %v330 = vpop.f32.mrf.mxu0
  %v331 = vadd.f32 %v308, %v330
  %332 = vdwg.mxu0
  %333 = vmatpush.msra.mxu0 %v149
  %334 = vmatpush.msra.mxu0 %v148
  %335 = vmatpush.msra.mxu0 %v147
  %336 = vmatpush.msra.mxu0 %v146
  %337 = vmatpush.msra.mxu0 %v145
  %338 = vmatpush.msra.mxu0 %v144
  %339 = vmatpush.msra.mxu0 %v143
  %340 = vmatpush.msra.mxu0 %v142
  %341 = vmatpush.msra.mxu0 %v141
  %342 = vmatpush.msra.mxu0 %v140
  %343 = vmatpush.msra.mxu0 %v139
  %344 = vmatpush.msra.mxu0 %v138
  %345 = vmatpush.msra.mxu0 %v137
  %346 = vmatpush.msra.mxu0 %v136
  %347 = vmatpush.msra.mxu0 %v135
  %348 = vmatpush.msra.mxu0 %v134
  %349 = vmatmul.f32.gmra.mxu0 %v255
  %v350 = vpop.f32.mrf.mxu0
  %v351 = vadd.f32 %v328, %v350
  %352 = vmatmul.f32.gmra.mxu0 %v259
  %v353 = vpop.f32.mrf.mxu0
  %v354 = vadd.f32 %v331, %v353
  %355 = vdwg.mxu0
  %356 = vst [vmem:[%s5] sm:$0xff] %v351
  %357 = vst [vmem:[%s5 + $0x8] sm:$0xff] %v354
  // Predicated region
  $region22: #{feed_forward.1} parent=0 // pred_check
    _
  $region23: #{feed_forward.1} parent=0 // pred_check_branch
    %359 = sbr.rel (0) target = $region25
  $region24: #{feed_forward.1} parent=0 // pred_region
    _
  $region25: #{feed_forward.1} parent=0 // pred_fallthru
    _
  // Predicated region
  $region26: #{feed_forward.1} parent=0 // pred_check
    _
  $region27: #{feed_forward.1} parent=0 // pred_check_branch
    %361 = sbr.rel (0) target = $region29
  $region28: #{feed_forward.1} parent=0 // pred_region
    _
  $region29: #{feed_forward.1} parent=0 // pred_fallthru
    _

</llo_original>
